<compile_context>
chip_gen: v7x
topology: tpu7x:2x2x1
jax: 0.10.0
libtpu: 0.0.40
codegen_flags: <defaults>
</compile_context>

<pallas_src>
import functools
import math

import numpy as np
import jax
import jax.numpy as jnp
from jax import lax
from jax.experimental import pallas as pl
from jax.experimental.pallas import tpu as pltpu


def _round_up(x: int, m: int) -> int:
    return ((x + m - 1) // m) * m


def _table_kernel(const_ref, o_ref, *, fold: int, tile_rows: int, max_len: int):
    """Writes one (tile_rows, Dout) tile of the folded relative-sin table.

    Folded element (r, c) maps to original table entry
        orig_row = r * fold + c // dim_model,   d = c % dim_model,
    value = sin(pos * inv_freq[d] + phase[d]),  pos = max_len - 1 - orig_row,
    phase = 0 for even d (sin) and pi/2 for odd d (cos = sin(x + pi/2)).

    const_ref row 0: inv_freq (tiled across folds)
    const_ref row 1: phase - (c // dim_model) * inv_freq
    so per output element the kernel does one mul, one add and one sin.
    """
    l = pl.program_id(0)
    inv_freq = const_ref[0:1, :]                                   # (1, Dout)
    bias = const_ref[1:2, :]                                       # (1, Dout)

    # Scalar part of the position hoisted into a per-tile (1, Dout) row.
    base_pos = ((max_len - 1) - (fold * tile_rows) * l).astype(jnp.float32)
    base_angle = base_pos * inv_freq + bias                        # (1, Dout)
    step = (-float(fold)) * inv_freq                               # (1, Dout)

    row = lax.broadcasted_iota(jnp.int32, o_ref.shape, 0).astype(jnp.float32)
    o_ref[...] = jnp.sin(row * step + base_angle).astype(o_ref.dtype)


class RelSinPosEncoding:
    """JAX/Pallas port of the PyTorch RelSinPosEncoding module."""

    def __init__(self, max_len: int, dim_model: int, causal: bool = False,
                 dtype=jnp.float32):
        assert dim_model % 2 == 0, "dim_model must be even (sin/cos pairs)"
        self.max_len = max_len
        self.dim_model = dim_model
        self.causal = causal
        self.dtype = dtype

        D = dim_model
        rows = 2 * max_len - 1
        itemsize = np.dtype(dtype).itemsize

        # Lane-dense folding: Dout = lcm(D, 128) -> unmasked full-lane stores
        # for any even dim_model.  Capped so Dout stays reasonable.
        dout = math.lcm(D, 128)
        if dout > 4096:
            dout = D
        fold = dout // D

        rows_folded = -(-rows // fold)
        rows8 = _round_up(rows_folded, 8)

        # Tile selection (see header comment): big tiles, VMEM-budgeted,
        # >= 2 grid steps when possible (v7x megacore), minimal padding.
        per_buf_budget = 6 * 2 ** 20                     # 2 bufs -> ~12 MiB
        budget_rows = max(8, ((per_buf_budget // (dout * itemsize)) // 8) * 8)
        tl_cap = min(2048, budget_rows)
        n = max(1, -(-rows8 // tl_cap))
        if n == 1 and rows8 >= 16:
            n = 2
        tl = _round_up(-(-rows8 // n), 8)
        rows_pad = n * tl

        # Per-lane constants computed in float64 so the f32 inv_freq / bias
        # are correctly rounded.
        c = np.arange(dout)
        d = c % D
        rowoff = (c // D).astype(np.float64)
        i = (d // 2).astype(np.float64)
        inv_freq = 10000.0 ** (-2.0 * i / float(D))
        phase = np.where(d % 2 == 0, 0.0, np.pi / 2.0)
        bias = phase - rowoff * inv_freq
        const = jnp.asarray(np.stack([inv_freq, bias]).astype(np.float32))

        kernel = functools.partial(_table_kernel, fold=fold, tile_rows=tl,
                                   max_len=max_len)
        cost = pl.CostEstimate(
            flops=3 * rows_pad * dout,
            transcendentals=rows_pad * dout,
            bytes_accessed=rows_pad * dout * itemsize + const.size * 4,
        )

        table = pl.pallas_call(
            kernel,
            out_shape=jax.ShapeDtypeStruct((rows_pad, dout), dtype),
            grid=(n,),
            in_specs=[pl.BlockSpec((2, dout), lambda l: (0, 0))],
            out_specs=pl.BlockSpec((tl, dout), lambda l: (l, 0)),
            compiler_params=pltpu.CompilerParams(
                dimension_semantics=("parallel",),
                vmem_limit_bytes=32 * 1024 * 1024,
            ),
            cost_estimate=cost,
        )(const)

        # Unfold lanes back to (2*max_len-1, D): register_buffer analogue.
        self.pos_encoding = table.reshape(rows_pad * fold, D)[:rows]

    def __call__(self, batch_size: int = 1, seq_len=None, hidden_len: int = 0):
        max_len = self.max_len
        enc = self.pos_encoding
        if self.causal:
            if seq_len is not None:
                R = enc[max_len - seq_len - hidden_len:max_len]
            else:
                R = enc[:max_len]
        elif seq_len is not None:
            R = enc[max_len - seq_len - hidden_len:max_len - 1 + seq_len]
        else:
            R = enc
        # Lazy batch broadcast (stays a view when consumed inside the same jit).
        return jnp.broadcast_to(R[None], (batch_size,) + R.shape)


def _reference(max_len, dim_model, causal, batch_size, seq_len, hidden_len):
    """Pure-JAX reference mirroring the torch buffer + forward."""
    pos_left = jnp.arange(max_len - 1, 0, -1, dtype=jnp.float32)
    pos_right = jnp.arange(0, -max_len, -1, dtype=jnp.float32)
    pos = jnp.concatenate([pos_left, pos_right], axis=0)[:, None]
    i = jnp.arange(0, dim_model // 2, dtype=jnp.float32)[None, :]
    angles = pos / (10000.0 ** (2.0 * i / dim_model))
    enc = jnp.zeros((2 * max_len - 1, dim_model), jnp.float32)
    enc = enc.at[:, 0::2].set(jnp.sin(angles))
    enc = enc.at[:, 1::2].set(jnp.cos(angles))
    if causal:
        if seq_len is not None:
            R = enc[max_len - seq_len - hidden_len:max_len]
        else:
            R = enc[:max_len]
    elif seq_len is not None:
        R = enc[max_len - seq_len - hidden_len:max_len - 1 + seq_len]
    else:
        R = enc
    return jnp.broadcast_to(R[None], (batch_size,) + R.shape)


if __name__ == "__main__":
    # Module has no learnable weights (deterministic sinusoidal buffer).
    _ = jax.random.PRNGKey(0)

    # Case 1: non-causal, dim_model < 128 (lane-dense fold = 4).
    m1 = RelSinPosEncoding(max_len=16, dim_model=32, causal=False)
    r1 = jax.block_until_ready(m1(batch_size=2, seq_len=8, hidden_len=0))
    ref1 = _reference(16, 32, False, 2, 8, 0)
    assert r1.shape == (2, 15, 32), r1.shape
    assert jnp.allclose(r1, ref1, atol=1e-5, rtol=1e-5)

    # Case 2: causal, dim_model = 128 (fold = 1, two grid steps), hidden ctx.
    m2 = RelSinPosEncoding(max_len=16, dim_model=128, causal=True)
    r2 = jax.block_until_ready(m2(batch_size=2, seq_len=8, hidden_len=4))
    ref2 = _reference(16, 128, True, 2, 8, 4)
    assert r2.shape == (2, 12, 128), r2.shape
    assert jnp.allclose(r2, ref2, atol=1e-5, rtol=1e-5)

    # Case 3: non-causal, seq_len=None (full 2*max_len-1 window).
    r3 = jax.block_until_ready(m1(batch_size=3))
    ref3 = _reference(16, 32, False, 3, None, 0)
    assert r3.shape == (3, 31, 32), r3.shape
    assert jnp.allclose(r3, ref3, atol=1e-5, rtol=1e-5)

    # Case 4: dim_model = 96 (lcm fold: Dout = 384, fold = 4).
    m4 = RelSinPosEncoding(max_len=8, dim_model=96, causal=False)
    r4 = jax.block_until_ready(m4(batch_size=2, seq_len=4, hidden_len=0))
    ref4 = _reference(8, 96, False, 2, 4, 0)
    assert r4.shape == (2, 7, 96), r4.shape
    assert jnp.allclose(r4, ref4, atol=1e-5, rtol=1e-5)

    # Case 5: bf16 output option (halves table storage / writeback).
    m5 = RelSinPosEncoding(max_len=16, dim_model=32, causal=False,
                           dtype=jnp.bfloat16)
    r5 = jax.block_until_ready(m5(batch_size=2, seq_len=8, hidden_len=0))
    assert r5.dtype == jnp.bfloat16 and r5.shape == (2, 15, 32)
    assert jnp.allclose(r5.astype(jnp.float32), ref1, atol=1e-2, rtol=1e-2)

    print("KERNEL_OK")
</pallas_src>

<mosaic_0001>
module attributes {stable_mosaic.version = 11 : i64} {
  func.func @_table_kernel(%arg0: i32, %arg1: memref<2x128xf32, #tpu.memory_space<vmem>>, %arg2: memref<8x128xf32, #tpu.memory_space<vmem>>) attributes {dimension_semantics = [#tpu.dimension_semantics<parallel>], iteration_bounds = array<i64: 1>, scalar_prefetch = 0 : i64, scratch_operands = 0 : i64, tpu.core_type = #tpu.core_type<tc>, window_params = [{pipeline_mode = #tpu.pipeline_mode<synchronous>, transform_indices = @transform_0, window_bounds = array<i64: 2, 128>}, {transform_indices = @transform_1, window_bounds = array<i64: 8, 128>}]} {
    %c0 = arith.constant 0 : index
    %c0_0 = arith.constant 0 : index
    %0 = vector.load %arg1[%c0, %c0_0] : memref<2x128xf32, #tpu.memory_space<vmem>>, vector<1x128xf32>
    %c1 = arith.constant 1 : index
    %c0_1 = arith.constant 0 : index
    %1 = vector.load %arg1[%c1, %c0_1] : memref<2x128xf32, #tpu.memory_space<vmem>>, vector<1x128xf32>
    %c32_i32 = arith.constant 32 : i32
    %2 = arith.muli %c32_i32, %arg0 : i32
    %c15_i32 = arith.constant 15 : i32
    %3 = arith.subi %c15_i32, %2 : i32
    %4 = arith.sitofp %3 : i32 to f32
    %5 = vector.broadcast %4 : f32 to vector<1x128xf32>
    %6 = arith.mulf %5, %0 : vector<1x128xf32>
    %7 = arith.addf %6, %1 : vector<1x128xf32>
    %cst = arith.constant -4.000000e+00 : f32
    %8 = vector.broadcast %cst : f32 to vector<1x128xf32>
    %9 = arith.mulf %8, %0 : vector<1x128xf32>
    %10 = tpu.iota {dimensions = array<i32: 0>} : vector<8x128xi32>
    %11 = arith.sitofp %10 : vector<8x128xi32> to vector<8x128xf32>
    %12 = vector.broadcast %9 : vector<1x128xf32> to vector<8x128xf32>
    %13 = arith.mulf %11, %12 : vector<8x128xf32>
    %14 = vector.broadcast %7 : vector<1x128xf32> to vector<8x128xf32>
    %15 = arith.addf %13, %14 : vector<8x128xf32>
    %16 = math.sin %15 : vector<8x128xf32>
    %c0_2 = arith.constant 0 : index
    %c0_3 = arith.constant 0 : index
    %17 = vector.load %arg2[%c0_2, %c0_3] : memref<8x128xf32, #tpu.memory_space<vmem>>, vector<8x128xf32>
    tpu.vector_store %arg2[%c0_2, %c0_3], %16 {strides = array<i32>} : memref<8x128xf32, #tpu.memory_space<vmem>>, vector<8x128xf32>,
    return
  }
  func.func @transform_0(%arg0: i32) -> (i32, i32) {
    %c0_i32 = arith.constant 0 : i32
    %c0_i32_0 = arith.constant 0 : i32
    %c0_i32_1 = arith.constant 0 : i32
    return %c0_i32, %c0_i32_0 : i32, i32
  }
  func.func @transform_1(%arg0: i32) -> (i32, i32) {
    %c0_i32 = arith.constant 0 : i32
    %c0_i32_0 = arith.constant 0 : i32
    return %arg0, %c0_i32 : i32, i32
  }
}

</mosaic_0001>

<llo_original>
// kernel: tpu_custom_call.1
$region0: #{tpu_custom_call.1}
  #allocation0 [shape = 'u32[]', space=smem, size = 0x4, offset = 0x4, fixed_abs, tag = 'smem constant byte address 0x4 - core index']
  #allocation1 [shape = 'u32[144,128]{1,0:T(1,128)}', space=vmem, size = 0x12000, scoped, tag = 'internal scratch']
  %s0 = inlined_call_operand.hbm [shape: f32[2,128], index: 0, kind: input, shape index: {}]
  %s1 = inlined_call_operand.hbm [shape: f32[8,128], index: 1, kind: output, shape index: {}]
  %s2 = sld [smem:[#allocation0]]
  $region18: #{tpu_custom_call.1} parent=0
    _
  %s4 = ssub.s32 1, %s2
  %s5 = scalar_select 0, %s4, %s2
  $region1: #{tpu_custom_call.1} parent=0
    #allocation2 [shape = 'u8[1024]{0}', space=vmem, size = 0x400, scoped, tag = 'input window, operand 0, single buffered']
    #allocation3 [shape = 's32[1]{0}', space=sflag, size = 0x4, scoped, tag = 'scoped memory for tpu_custom_call.1']
    #allocation4 [shape = 's32[1]{0}', space=sflag, size = 0x4, scoped, tag = 'scoped memory for tpu_custom_call.1']
    #allocation5 [shape = 'u8[4096]{0}', space=vmem, size = 0x1000, scoped, tag = 'output window, operand 0, single buffered']
    %6 = vsyncpa [#allocation3], 0
    %7 = vsyncpa [#allocation4], 0
    // Predicated region
    $region2: #{tpu_custom_call.1} parent=1 // pred_check
      _
    $region3: #{tpu_custom_call.1} parent=1 // pred_check_branch
      %9 = sbr.rel (0) target = $region5
    $region4: #{tpu_custom_call.1} parent=1 // pred_region
      %s11 = ssub.s32 32, 32
      %12 = vsyncadd [#allocation3], %s11
      %s14 = sshll.u32 [#allocation2], 4
      %s15 = int_to_ptr.vmem [resolvable:$true] %s14
      %17 = dma.hbm_to_vmem [thread:$0]  %s0, 32, %s15, [#allocation3]
    $region5: #{tpu_custom_call.1} parent=1 // pred_fallthru
      _
    // Predicated region
    $region6: #{tpu_custom_call.1} parent=1 // pred_check
      _
    $region7: #{tpu_custom_call.1} parent=1 // pred_check_branch
      %19 = sbr.rel (0) target = $region9
    $region8: #{tpu_custom_call.1} parent=1 // pred_region
      %20 = dma.done [#allocation3], 32
    $region9: #{tpu_custom_call.1} parent=1 // pred_fallthru
      _
    %v21 = vld [vmem:[#allocation2] sm:$0x1]
    %v22 = vld [vmem:[#allocation2 + $0x1] sm:$0x1]
    %s23 = smul.u32 0, 32
    %s24 = ssub.s32 15, %s23
    %s25 = scvt.s32.f32 %s24
    %v26 = vstv %s25
    %v27 = vmul.f32 %v26, %v21
    %v28 = vadd.f32 %v27, %v22
    %v29 = vmul.f32 %v21, -4.0
    %v30 = vlaneseq
    %v31 = vshrl.u32 %v30, 7
    %v32 = vcvt.s32.f32 %v31
    %v33 = vlaneseq
    %v34 = vshrl.u32 %v33, 7
    %v35 = vsub.s32 0, %v34
    %v36 = vrot.slane %v29, %v35
    %v37 = vmul.f32 %v32, %v36
    %v38 = vlaneseq
    %v39 = vshrl.u32 %v38, 7
    %v40 = vsub.s32 0, %v39
    %v41 = vrot.slane %v28, %v40
    %v42 = vadd.f32 %v37, %v41
    %v43 = vand.u32 2147483647, %v42
    %vm44 = vcmp.le.f32.partialorder %v43, 0.7853982
    %vm45 = vcmp.lt.s32.totalorder %v42, 0
    %v46 = vand.u32 %v42, 2139095040
    %v47 = vshrl.u32 %v46, 23
    %v48 = vsub.s32 %v47, 127
    %v49 = vand.u32 2147483647, %v42
    %v50 = vand.u32 %v49, 8388607
    %v51 = vor.u32 %v50, 8388608
    %v52 = vsub.s32 0, %v51
    %v53 = vadd.s32 %v48, 1
    %vm54 = vcmp.gt.s32.totalorder %v53, 0
    %v55 = vsel %vm54, %v53, 0
    %v56 = vshrl.u32 %v55, 5
    %v57 = vand.u32 %v55, 31
    %v58 = vsub.s32 32, %v57
    %v59 = vshrl.u32 683565275, %v58
    %v60 = vshll.u32 683565275, %v57
    %v61 = vshrl.u32 2475754826, %v58
    %v62 = vor.u32 %v60, %v61
    %v63 = vshll.u32 2475754826, %v57
    %v64 = vshrl.u32 2131351028, %v58
    %v65 = vor.u32 %v63, %v64
    %v66 = vshll.u32 2131351028, %v57
    %v67 = vshrl.u32 2102212464, %v58
    %v68 = vor.u32 %v66, %v67
    %v69 = vshll.u32 2102212464, %v57
    %v70 = vshrl.u32 920167782, %v58
    %v71 = vor.u32 %v69, %v70
    %v72 = vshll.u32 920167782, %v57
    %v73 = vshrl.u32 1326507024, %v58
    %v74 = vor.u32 %v72, %v73
    %vm75 = vcmp.lt.s32.totalorder %v56, 1
    %vm76 = vcmp.lt.s32.totalorder %v56, 2
    %vm77 = vcmp.lt.s32.totalorder %v56, 3
    %vm78 = vcmp.lt.s32.totalorder %v56, 4
    %v79 = vsel %vm75, %v59, %v62
    %v80 = vsel %vm78, %v68, 2102212464
    %v81 = vsel %vm77, %v65, %v80
    %v82 = vsel %vm76, %v79, %v81
    %v83 = vsel %vm75, %v62, %v65
    %v84 = vsel %vm78, %v71, 920167782
    %v85 = vsel %vm77, %v68, %v84
    %v86 = vsel %vm76, %v83, %v85
    %v87 = vsel %vm75, %v65, %v68
    %v88 = vsel %vm78, %v74, 1326507024
    %v89 = vsel %vm77, %v71, %v88
    %v90 = vsel %vm76, %v87, %v89
    %v91 = vshll.u32 %v51, 8
    %v92 = vmul.u32.u64.compose %v91, %v90
    %v93 = vextract.low.u32 %v92
    %v94 = vextract.high.u32 %v92
    %v95 = vmul.u32.u64.compose %v91, %v86
    %v96 = vextract.low.u32 %v95
    %v97 = vextract.high.u32 %v95
    %v98 = vmul.u32 %v91, %v82
    %v99 = vadd.s32 %v94, %v96
    %vm100 = vc.u32 %v94, %v96
    %v101 = vadd.s32 %v97, 1
    %v102 = vsel %vm100, %v101, %v97
    %v103 = vadd.s32 %v98, %v102
    %v104 = vadd.s32 %v103, 536870912
    %v105 = vshrl.u32 %v104, 30
    %v106 = vshll.u32 %v105, 30
    %v107 = vsub.s32 %v103, %v106
    %vm108 = vcmp.lt.s32.totalorder %v107, 0
    %v109 = vsub.s32 0, %v107
    %v110 = vsel %vm108, %v109, %v107
    %v111 = vclz %v110
    %v112 = vsub.s32 %v111, 2
    %vm113 = vcmp.gt.s32.totalorder 0, %v112
    %v114 = vsel %vm113, 0, %v112
    %v115 = vsub.s32 32, %v114
    %v116 = vshll.u32 %v107, %v114
    %v117 = vshrl.u32 %v99, %v115
    %v118 = vor.u32 %v116, %v117
    %v119 = vsub.s32 4294967266, %v114
    %v120 = vadd.s32 %v119, 127
    %v121 = vshll.u32 %v120, 23
    %v122 = vor.u32 4788187, %v121
    %v123 = vand.u32 2147483647, %v122
    %v125 = vcvt.s32.f32 %v118
    %v126 = vmul.f32 %v125, %v123
    %v127 = vxor.u32 %v126, 2147483648
    %v128 = vsel %vm45, %v127, %v126
    %v129 = vsub.s32 4, %v105
    %v130 = vsel %vm45, %v129, %v105
    %v131 = vsel %vm44, %v42, %v128
    %v132 = vsel %vm44, 0, %v130
    %v133 = vcosq.f32.pop %v131
    %v134 = vsinq.f32.pop %v131
    %vm135 = vweird.f32 %v42
    %v136 = vadd.s32 %v132, 3
    %v137 = vand.u32 %v136, 3
    %vm138 = vcmp.lt.s32.totalorder %v137, 2
    %vm139 = vcmp.eq.s32.totalorder %v137, 0
    %v140 = vxor.u32 %v134, 2147483648
    %v141 = vsel %vm139, %v133, %v140
    %vm142 = vcmp.eq.s32.totalorder %v137, 2
    %v143 = vxor.u32 %v133, 2147483648
    %v144 = vsel %vm142, %v143, %v134
    %v145 = vsel %vm138, %v141, %v144
    %v146 = vsel %vm135, nan, %v145
    %147 = vst [vmem:[#allocation5] sm:$0xff] %v146
    // Predicated region
    $region10: #{tpu_custom_call.1} parent=1 // pred_check
      _
    $region11: #{tpu_custom_call.1} parent=1 // pred_check_branch
      %149 = sbr.rel (0) target = $region13
    $region12: #{tpu_custom_call.1} parent=1 // pred_region
      %s151 = ssub.s32 128, 128
      %152 = vsyncadd [#allocation4], %s151
      %s154 = sshll.u32 [#allocation5], 4
      %s155 = int_to_ptr.vmem [resolvable:$true] %s154
      %157 = dma.vmem_to_hbm [thread:$0]  %s155, 128, %s1, [#allocation4]
    $region13: #{tpu_custom_call.1} parent=1 // pred_fallthru
      _
    // Predicated region
    $region14: #{tpu_custom_call.1} parent=1 // pred_check
      _
    $region15: #{tpu_custom_call.1} parent=1 // pred_check_branch
      %159 = sbr.rel (0) target = $region17
    $region16: #{tpu_custom_call.1} parent=1 // pred_region
      %160 = dma.done [#allocation4], 128
    $region17: #{tpu_custom_call.1} parent=1 // pred_fallthru
      _
    %161 = vsyncpa [#allocation3], 1
    %162 = vsyncpa [#allocation4], 1

</llo_original>
